<compile_context>
chip_gen: v6e
topology: v6e:2x2x1
jax: 0.10.0
libtpu: 0.0.40
codegen_flags: <defaults>
</compile_context>

<pallas_src>
import jax
import jax.numpy as jnp
from jax import lax
from jax.experimental import pallas as pl
from jax.experimental.pallas import tpu as pltpu


def _patch_embed_kernel(x_ref, w_ref, o_ref):
    # x_ref: (1, H+2, (W+2)*C)   bf16, spatially zero-padded, C folded into lanes
    # w_ref: (3, (W+2)*C, W*E)   bf16, banded block weight per kernel row dy
    # o_ref: (1, H, W*E)         output dtype (lane-dense store)
    H = o_ref.shape[1]
    WE = o_ref.shape[2]

    x2d = x_ref[0]  # (H+2, (W+2)*C)

    acc = jnp.zeros((H, WE), dtype=jnp.float32)
    for dy in range(3):  # static unroll: 3 MXU matmuls, f32 accumulation
        acc += jnp.dot(x2d[dy:dy + H, :], w_ref[dy],
                       preferred_element_type=jnp.float32)

    o_ref[0] = acc.astype(o_ref.dtype)


def _build_banded_weight(weight_eck3k3, W):
    """Conv weight (E, C, 3, 3) -> banded matmul weight (3, (W+2)*C, W*E).

    BigW[dy, wk*C + c, w*E + e] = weight[e, c, dy, wk - w] if 0 <= wk - w <= 2 else 0.
    """
    E, C, _, _ = weight_eck3k3.shape
    Wp2 = W + 2
    w2 = jnp.transpose(weight_eck3k3, (2, 3, 1, 0))          # (dy, dx, c, e)

    wk = jnp.arange(Wp2)[:, None]
    w = jnp.arange(W)[None, :]
    dx = wk - w                                               # (Wp2, W)
    valid = (dx >= 0) & (dx <= 2)
    dx_c = jnp.clip(dx, 0, 2)

    big = w2[:, dx_c, :, :]                                   # (3, Wp2, W, C, E)
    big = jnp.where(valid[None, :, :, None, None], big, 0.0)
    big = jnp.transpose(big, (0, 1, 3, 2, 4))                 # (3, Wp2, C, W, E)
    return big.reshape(3, Wp2 * C, W * E)


def overlap_patch_embed(x_nchw, weight_eck3k3):
    """x_nchw: (B, C, H, W) like PyTorch.  weight: (E, C, 3, 3) like nn.Conv2d.
    Returns (B, H*W, E): Conv2d(3x3, stride 1, pad 1, no bias) then
    rearrange 'b c h w -> b (h w) c'.  bf16 operands, f32 accumulation."""
    B, C, H, W = x_nchw.shape
    E = weight_eck3k3.shape[0]

    # Layout plumbing in plain JAX: NCHW -> NHWC, zero-pad spatially by 1,
    # fold C into the lane axis, cast operands to bf16 (f32 accumulation in-kernel).
    x_nhwc = jnp.transpose(x_nchw, (0, 2, 3, 1))
    x_pad = jnp.pad(x_nhwc, ((0, 0), (1, 1), (1, 1), (0, 0)))
    x_folded = x_pad.reshape(B, H + 2, (W + 2) * C).astype(jnp.bfloat16)

    big_w = _build_banded_weight(weight_eck3k3, W).astype(jnp.bfloat16)  # (3, (W+2)*C, W*E)

    # Actual MXU work / traffic (advisory for XLA scheduling).
    flops = 2 * B * H * 3 * ((W + 2) * C) * (W * E)
    bytes_accessed = (x_folded.size * x_folded.dtype.itemsize
                      + big_w.size * big_w.dtype.itemsize
                      + B * H * W * E * x_nchw.dtype.itemsize)

    out = pl.pallas_call(
        _patch_embed_kernel,
        out_shape=jax.ShapeDtypeStruct((B, H, W * E), x_nchw.dtype),
        grid_spec=pltpu.PrefetchScalarGridSpec(
            num_scalar_prefetch=0,
            grid=(B,),
            in_specs=[
                pl.BlockSpec((1, H + 2, (W + 2) * C), lambda b: (b, 0, 0)),
                pl.BlockSpec((3, (W + 2) * C, W * E), lambda b: (0, 0, 0)),  # resident weight
            ],
            out_specs=pl.BlockSpec((1, H, W * E), lambda b: (b, 0, 0)),
        ),
        compiler_params=pltpu.CompilerParams(
            dimension_semantics=("parallel",),
            vmem_limit_bytes=32 * 1024 * 1024),
        cost_estimate=pl.CostEstimate(
            flops=flops, transcendentals=0, bytes_accessed=bytes_accessed),
    )(x_folded, big_w)

    # (B, H, W*E) -> (B, H*W, E): same contiguous layout, free reshape.
    return out.reshape(B, H * W, E)


def _reference(x_nchw, weight_eck3k3):
    # Pure-JAX reference: conv2d (stride 1, pad 1, no bias) + 'b c h w -> b (h w) c'.
    y = lax.conv_general_dilated(
        x_nchw, weight_eck3k3,
        window_strides=(1, 1), padding=((1, 1), (1, 1)),
        dimension_numbers=("NCHW", "OIHW", "NCHW"))
    B, E, H, W = y.shape
    return jnp.transpose(y.reshape(B, E, H * W), (0, 2, 1))


if __name__ == "__main__":
    # Small shapes consistent with the module: in_c=4, embed_dim=32, 16x16 spatial.
    B, C, H, W, E = 2, 4, 16, 16, 32

    key = jax.random.PRNGKey(0)
    kx, kw = jax.random.split(key)
    x = jax.random.normal(kx, (B, C, H, W), dtype=jnp.float32)
    weight = 0.1 * jax.random.normal(kw, (E, C, 3, 3), dtype=jnp.float32)

    out = overlap_patch_embed(x, weight)
    jax.block_until_ready(out)
    assert out.shape == (B, H * W, E)

    # Reference with bf16-rounded operands (matches kernel numerics up to f32
    # accumulation order) — tight tolerance.
    ref_bf16 = _reference(x.astype(jnp.bfloat16).astype(jnp.float32),
                          weight.astype(jnp.bfloat16).astype(jnp.float32))
    assert jnp.allclose(out, ref_bf16, rtol=1e-3, atol=1e-3), "mismatch vs bf16-operand reference"

    # Full-f32 PyTorch-equivalent conv — only bf16 operand rounding differs.
    ref_f32 = _reference(x, weight)
    assert jnp.allclose(out, ref_f32, rtol=5e-2, atol=5e-2), "mismatch vs f32 reference conv"

    print("KERNEL_OK")
</pallas_src>

<mosaic_0001>
module attributes {stable_mosaic.version = 11 : i64} {
  func.func @_patch_embed_kernel(%arg0: i32, %arg1: memref<1x18x72xbf16, #tpu.memory_space<vmem>>, %arg2: memref<3x72x512xbf16, #tpu.memory_space<vmem>>, %arg3: memref<1x16x512xf32, #tpu.memory_space<vmem>>) attributes {dimension_semantics = [#tpu.dimension_semantics<parallel>], iteration_bounds = array<i64: 2>, scalar_prefetch = 0 : i64, scratch_operands = 0 : i64, tpu.core_type = #tpu.core_type<tc>, window_params = [{transform_indices = @transform_0, window_bounds = array<i64: 1, 18, 72>}, {pipeline_mode = #tpu.pipeline_mode<synchronous>, transform_indices = @transform_1, window_bounds = array<i64: 3, 72, 512>}, {transform_indices = @transform_2, window_bounds = array<i64: 1, 16, 512>}]} {
    %c0 = arith.constant 0 : index
    %c0_0 = arith.constant 0 : index
    %c0_1 = arith.constant 0 : index
    %0 = vector.load %arg1[%c0, %c0_0, %c0_1] : memref<1x18x72xbf16, #tpu.memory_space<vmem>>, vector<1x18x72xbf16>
    %1 = vector.shape_cast %0 : vector<1x18x72xbf16> to vector<18x72xbf16>
    %cst = arith.constant 0.000000e+00 : f32
    %2 = vector.broadcast %cst : f32 to vector<16x512xf32>
    %3 = vector.extract_strided_slice %1 {offsets = [0, 0], sizes = [16, 72], strides = [1, 1]} : vector<18x72xbf16> to vector<16x72xbf16>
    %c0_2 = arith.constant 0 : index
    %c0_3 = arith.constant 0 : index
    %c0_4 = arith.constant 0 : index
    %4 = vector.load %arg2[%c0_2, %c0_3, %c0_4] : memref<3x72x512xbf16, #tpu.memory_space<vmem>>, vector<1x72x512xbf16>
    %5 = vector.shape_cast %4 : vector<1x72x512xbf16> to vector<72x512xbf16>
    %cst_5 = arith.constant dense<0.000000e+00> : vector<16x512xf32>
    %6 = tpu.matmul %3, %5, %cst_5 {dimension_numbers = #tpu.dot_dimension_numbers<[1], [0], [0], [1], [0, 0, 1, 1], [], []>} : vector<16x72xbf16>, vector<72x512xbf16>, vector<16x512xf32> -> vector<16x512xf32>
    %7 = arith.addf %2, %6 : vector<16x512xf32>
    %8 = vector.extract_strided_slice %1 {offsets = [1, 0], sizes = [16, 72], strides = [1, 1]} : vector<18x72xbf16> to vector<16x72xbf16>
    %c1 = arith.constant 1 : index
    %c0_6 = arith.constant 0 : index
    %c0_7 = arith.constant 0 : index
    %9 = vector.load %arg2[%c1, %c0_6, %c0_7] : memref<3x72x512xbf16, #tpu.memory_space<vmem>>, vector<1x72x512xbf16>
    %10 = vector.shape_cast %9 : vector<1x72x512xbf16> to vector<72x512xbf16>
    %cst_8 = arith.constant dense<0.000000e+00> : vector<16x512xf32>
    %11 = tpu.matmul %8, %10, %cst_8 {dimension_numbers = #tpu.dot_dimension_numbers<[1], [0], [0], [1], [0, 0, 1, 1], [], []>} : vector<16x72xbf16>, vector<72x512xbf16>, vector<16x512xf32> -> vector<16x512xf32>
    %12 = arith.addf %7, %11 : vector<16x512xf32>
    %13 = vector.extract_strided_slice %1 {offsets = [2, 0], sizes = [16, 72], strides = [1, 1]} : vector<18x72xbf16> to vector<16x72xbf16>
    %c2 = arith.constant 2 : index
    %c0_9 = arith.constant 0 : index
    %c0_10 = arith.constant 0 : index
    %14 = vector.load %arg2[%c2, %c0_9, %c0_10] : memref<3x72x512xbf16, #tpu.memory_space<vmem>>, vector<1x72x512xbf16>
    %15 = vector.shape_cast %14 : vector<1x72x512xbf16> to vector<72x512xbf16>
    %cst_11 = arith.constant dense<0.000000e+00> : vector<16x512xf32>
    %16 = tpu.matmul %13, %15, %cst_11 {dimension_numbers = #tpu.dot_dimension_numbers<[1], [0], [0], [1], [0, 0, 1, 1], [], []>} : vector<16x72xbf16>, vector<72x512xbf16>, vector<16x512xf32> -> vector<16x512xf32>
    %17 = arith.addf %12, %16 : vector<16x512xf32>
    %c0_12 = arith.constant 0 : index
    %c0_13 = arith.constant 0 : index
    %c0_14 = arith.constant 0 : index
    %18 = vector.load %arg3[%c0_12, %c0_13, %c0_14] : memref<1x16x512xf32, #tpu.memory_space<vmem>>, vector<1x16x512xf32>
    %19 = vector.shape_cast %18 : vector<1x16x512xf32> to vector<16x512xf32>
    %20 = vector.shape_cast %17 : vector<16x512xf32> to vector<1x16x512xf32>
    tpu.vector_store %arg3[%c0_12, %c0_13, %c0_14], %20 {strides = array<i32>} : memref<1x16x512xf32, #tpu.memory_space<vmem>>, vector<1x16x512xf32>,
    return
  }
  func.func @transform_0(%arg0: i32) -> (i32, i32, i32) {
    %c0_i32 = arith.constant 0 : i32
    %c0_i32_0 = arith.constant 0 : i32
    %c0_i32_1 = arith.constant 0 : i32
    return %arg0, %c0_i32, %c0_i32_0 : i32, i32, i32
  }
  func.func @transform_1(%arg0: i32) -> (i32, i32, i32) {
    %c0_i32 = arith.constant 0 : i32
    %c0_i32_0 = arith.constant 0 : i32
    %c0_i32_1 = arith.constant 0 : i32
    %c0_i32_2 = arith.constant 0 : i32
    return %c0_i32, %c0_i32_0, %c0_i32_1 : i32, i32, i32
  }
  func.func @transform_2(%arg0: i32) -> (i32, i32, i32) {
    %c0_i32 = arith.constant 0 : i32
    %c0_i32_0 = arith.constant 0 : i32
    %c0_i32_1 = arith.constant 0 : i32
    return %arg0, %c0_i32, %c0_i32_0 : i32, i32, i32
  }
}

</mosaic_0001>

<llo_original>
// kernel: tpu_custom_call.1
$region0: #{tpu_custom_call.1}
  #allocation0 [shape = 'u32[]', space=smem, size = 0x4, offset = 0x4, fixed_abs, tag = 'smem constant byte address 0x4 - core index']
  #allocation1 [shape = 'u32[144,128]{1,0:T(1,128)}', space=vmem, size = 0x12000, scoped, tag = 'internal scratch']
  %s0 = inlined_call_operand.vmem [shape: bf16[2,18,72], index: 0, kind: input, shape index: {}]
  %s1 = inlined_call_operand.hbm [shape: bf16[3,72,512], index: 1, kind: input, shape index: {}]
  %s2 = inlined_call_operand.hbm [shape: f32[2,16,512], index: 2, kind: output, shape index: {}]
  %s3 = sld [smem:[#allocation0]]
  $region45: #{tpu_custom_call.1} parent=0
    _
  %s5 = ssub.s32 1, %s3
  %s6 = scalar_select 0, %s5, %s3
  $region1: #{tpu_custom_call.1} parent=0
    #allocation2 [shape = 'u8[221184]{0}', space=vmem, size = 0x36000, scoped, tag = 'input window, operand 1, single buffered']
    #allocation3 [shape = 's32[2]{0}', space=sflag, size = 0x8, scoped, tag = 'scoped memory for tpu_custom_call.1']
    #allocation4 [shape = 's32[2]{0}', space=sflag, size = 0x8, scoped, tag = 'scoped memory for tpu_custom_call.1']
    #allocation5 [shape = 'u8[65536]{0}', space=vmem, size = 0x10000, scoped, tag = 'output window, operand 0']
    %7 = vsyncpa [#allocation3], 0
    %8 = vsyncpa [#allocation4], 0
    %s9 = scalar_lea.sflag [#allocation4], 1
    %10 = vsyncpa %s9, 0
    loop: start=0, step=1, limit=4
    $region2: #{tpu_custom_call.1} parent=1 // loop_pre_header
      _
    $region3: #{tpu_custom_call.1} parent=1 // loop_header
      %s12 = sphi 0, %s16
      %p13 = scmp.ge.s32.totalorder %s12, 4
      %s22 = sphi 0, %s24
      %s25 = sphi 0, %s22
      %s26 = sphi 0, %s25
      %s42 = sphi 0, %s26
      %s46 = sphi 0, %s46
      %s48 = sphi 0, %s46
      %s49 = sphi 0, %s48
      %s63 = sphi 0, %s49
      %s69 = sphi 0, %s71
      %s72 = sphi 0, %s69
      %s73 = sphi 0, %s72
      %s89 = sphi 0, %s73
    $region4: #{tpu_custom_call.1} parent=1 // loop_header_branch
      %15 = sbr.rel (%p13) target = $region8
    $region5: #{tpu_custom_call.1} parent=1 // loop_body
      %s17 = ssub.s32 %s12, 1
      %s18 = ssub.s32 %s12, 2
      %s19 = sadd.s32 %s12, 1
      %s20 = ssub.s32 %s12, %s19
      %p21 = scmp.eq.s32.totalorder %s20, 0
      %s23 = sadd.s32 %s22, 1
      %s24 = scalar_select %p21, %s22, %s23
      %p27 = pneg %p21
      %p28 = scmp.eq.s32.totalorder %s12, 1
      %p29 = por %p27, %p28
      %p30 = scmp.ne.s32.totalorder %s22, %s25
      %p31 = scmp.eq.s32.totalorder %s12, 0
      %p32 = por %p30, %p31
      %p33 = scmp.ne.s32.totalorder %s22, %s25
      %p34 = scmp.eq.s32.totalorder %s17, 1
      %p35 = por %p33, %p34
      %p36 = scmp.ne.s32.totalorder %s25, %s26
      %p37 = scmp.eq.s32.totalorder %s17, 0
      %p38 = por %p36, %p37
      %p39 = scmp.ne.s32.totalorder %s25, %s26
      %p40 = scmp.eq.s32.totalorder %s18, 1
      %p41 = por %p39, %p40
      %p43 = scmp.ne.s32.totalorder %s26, %s42
      %p44 = scmp.eq.s32.totalorder %s18, 0
      %p45 = por %p43, %p44
      %s47 = sadd.s32 %s46, 1
      %p50 = scmp.eq.s32.totalorder %s12, 1
      %p51 = scmp.ne.s32.totalorder %s46, %s48
      %p52 = scmp.eq.s32.totalorder %s12, 0
      %p53 = por %p51, %p52
      %p54 = scmp.ne.s32.totalorder %s46, %s48
      %p55 = scmp.eq.s32.totalorder %s17, 1
      %p56 = por %p54, %p55
      %p57 = scmp.ne.s32.totalorder %s48, %s49
      %p58 = scmp.eq.s32.totalorder %s17, 0
      %p59 = por %p57, %p58
      %p60 = scmp.ne.s32.totalorder %s48, %s49
      %p61 = scmp.eq.s32.totalorder %s18, 1
      %p62 = por %p60, %p61
      %p64 = scmp.ne.s32.totalorder %s49, %s63
      %p65 = scmp.eq.s32.totalorder %s18, 0
      %p66 = por %p64, %p65
      %s67 = ssub.s32 %s12, %s19
      %p68 = scmp.eq.s32.totalorder %s67, 0
      %s70 = sadd.s32 %s69, 1
      %s71 = scalar_select %p68, %s69, %s70
      %p74 = pneg %p68
      %p75 = scmp.eq.s32.totalorder %s12, 1
      %p76 = por %p74, %p75
      %p77 = scmp.ne.s32.totalorder %s69, %s72
      %p78 = scmp.eq.s32.totalorder %s12, 0
      %p79 = por %p77, %p78
      %p80 = scmp.ne.s32.totalorder %s69, %s72
      %p81 = scmp.eq.s32.totalorder %s17, 1
      %p82 = por %p80, %p81
      %p83 = scmp.ne.s32.totalorder %s72, %s73
      %p84 = scmp.eq.s32.totalorder %s17, 0
      %p85 = por %p83, %p84
      %p86 = scmp.ne.s32.totalorder %s72, %s73
      %p87 = scmp.eq.s32.totalorder %s18, 1
      %p88 = por %p86, %p87
      %p90 = scmp.ne.s32.totalorder %s73, %s89
      %p91 = scmp.eq.s32.totalorder %s18, 0
      %p92 = por %p90, %p91
      %p93 = scmp.le.s32.totalorder 1, %s12
      %p94 = scmp.lt.s32.totalorder %s12, 3
      %p95 = pnand %p93, %p94
      %p96 = pneg %p95
      // Predicated region
      $region9: #{tpu_custom_call.1} parent=5 // pred_check
        _
      $region10: #{tpu_custom_call.1} parent=5 // pred_check_branch
        %98 = sbr.rel (%p95) target = $region12
      $region11: #{tpu_custom_call.1} parent=5 // pred_region
        %s99 = ssub.s32 %s12, 1
        // Predicated region
        $region13: #{tpu_custom_call.1} parent=11 // pred_check
          %p100 = pneg %p59
        $region14: #{tpu_custom_call.1} parent=11 // pred_check_branch
          %102 = sbr.rel (%p100) target = $region16
        $region15: #{tpu_custom_call.1} parent=11 // pred_region
          %s104 = ssub.s32 6912, 6912
          %105 = vsyncadd [#allocation3], %s104
          %s106 = sshll.u32 [#allocation2], 4
          %s107 = int_to_ptr.vmem [resolvable:$true] %s106
          %112 = dma.hbm_to_vmem [thread:$0]  %s1, 6912, %s107, [#allocation3], 256, 256, 16
        $region16: #{tpu_custom_call.1} parent=11 // pred_fallthru
          _
      $region12: #{tpu_custom_call.1} parent=5 // pred_fallthru
        _
      %p113 = scmp.lt.s32.totalorder %s12, 2
      // Predicated region
      $region17: #{tpu_custom_call.1} parent=5 // pred_check
        %p114 = pneg %p113
      $region18: #{tpu_custom_call.1} parent=5 // pred_check_branch
        %116 = sbr.rel (%p114) target = $region20
      $region19: #{tpu_custom_call.1} parent=5 // pred_region
        // Predicated region
        $region21: #{tpu_custom_call.1} parent=19 // pred_check
          %p117 = pneg %p32
        $region22: #{tpu_custom_call.1} parent=19 // pred_check_branch
          %119 = sbr.rel (%p117) target = $region24
        $region23: #{tpu_custom_call.1} parent=19 // pred_region
          %p120 = scmp.lt.s32.totalorder %s12, 1
          %s121 = scalar_select %p120, %s12, 1
          %s122 = smul.addr %s121, 3
          %s123 = smul.addr %s122, 4
          %s124 = scalar_lea.vmem %s0, %s123
        $region24: #{tpu_custom_call.1} parent=19 // pred_fallthru
          _
      $region20: #{tpu_custom_call.1} parent=5 // pred_fallthru
        _
      %p125 = scmp.le.s32.totalorder 1, %s12
      %p126 = scmp.lt.s32.totalorder %s12, 3
      %p127 = pnand %p125, %p126
      %p128 = pneg %p127
      // Predicated region
      $region25: #{tpu_custom_call.1} parent=5 // pred_check
        _
      $region26: #{tpu_custom_call.1} parent=5 // pred_check_branch
        %130 = sbr.rel (%p127) target = $region28
      $region27: #{tpu_custom_call.1} parent=5 // pred_region
        %s131 = ssub.s32 %s12, 1
        // Predicated region
        $region29: #{tpu_custom_call.1} parent=27 // pred_check
          %p132 = pneg %p59
        $region30: #{tpu_custom_call.1} parent=27 // pred_check_branch
          %134 = sbr.rel (%p132) target = $region32
        $region31: #{tpu_custom_call.1} parent=27 // pred_region
          %135 = dma.done [#allocation3], 6912
        $region32: #{tpu_custom_call.1} parent=27 // pred_fallthru
          _
        %p136 = scmp.lt.s32.totalorder %s17, 1
        %s137 = scalar_select %p136, %s17, 1
        %s138 = smul.addr %s137, 3
        %s139 = smul.addr %s138, 4
        %s140 = scalar_lea.vmem %s0, %s139
        %p141 = pneg %p38
        %p142 = pneg %p35
        %p143 = pneg %p59
        %p144 = pneg %p56
        %p145 = pneg %p85
        %p146 = pneg %p82
        %s147 = sand.u32 %s72, 1
        %s148 = scalar_lea.sflag [#allocation4], %s147
        %s149 = sand.u32 %s72, 1
        %s150 = smul.addr %s149, 64
        %s151 = scalar_lea.vmem [#allocation5], %s150
        %p152 = scmp.lt.s32.totalorder %s17, 1
        %s153 = scalar_select %p152, %s17, 1
        %s154 = smul.addr %s153, 3
        %s155 = smul.addr %s154, 4
        %s156 = scalar_lea.vmem %s0, %s155
        %v158 = vld [vmem:[%s156] sm:$0xf]
        %v159 = vld [vmem:[%s156 + $0x4] sm:$0xf]
        %v160 = vld [vmem:[%s156 + $0x8] sm:$0x1]
        %v161 = vld [vmem:[#allocation2] sm:$0xff]
        %v162 = vld [vmem:[#allocation2 + $0x8] sm:$0xff]
        %v163 = vld [vmem:[#allocation2 + $0x10] sm:$0xff]
        %v164 = vld [vmem:[#allocation2 + $0x18] sm:$0xff]
        %v165 = vld [vmem:[#allocation2 + $0x20] sm:$0xff]
        %v166 = vld [vmem:[#allocation2 + $0x28] sm:$0xff]
        %v167 = vld [vmem:[#allocation2 + $0x30] sm:$0xff]
        %v168 = vld [vmem:[#allocation2 + $0x38] sm:$0xff]
        %v169 = vld [vmem:[#allocation2 + $0x40] sm:$0xff]
        %v170 = vld [vmem:[#allocation2 + $0x48] sm:$0xff]
        %v171 = vld [vmem:[#allocation2 + $0x50] sm:$0xff]
        %v172 = vld [vmem:[#allocation2 + $0x58] sm:$0xff]
        %v173 = vld [vmem:[#allocation2 + $0x60] sm:$0xff]
        %v174 = vld [vmem:[#allocation2 + $0x68] sm:$0xff]
        %v175 = vld [vmem:[#allocation2 + $0x70] sm:$0xff]
        %v176 = vld [vmem:[#allocation2 + $0x78] sm:$0xff]
        %v177 = vld [vmem:[#allocation2 + $0x80] sm:$0xff]
        %v178 = vld [vmem:[#allocation2 + $0x88] sm:$0xff]
        %s179 = scalar_lea.vmem [#allocation2], 144
        %v180 = vld [vmem:[%s179] sm:$0xff]
        %v181 = vld [vmem:[%s179 + $0x8] sm:$0xff]
        %v182 = vld [vmem:[%s179 + $0x10] sm:$0xff]
        %v183 = vld [vmem:[%s179 + $0x18] sm:$0xff]
        %v184 = vld [vmem:[%s179 + $0x20] sm:$0xff]
        %v185 = vld [vmem:[%s179 + $0x28] sm:$0xff]
        %v186 = vld [vmem:[%s179 + $0x30] sm:$0xff]
        %v187 = vld [vmem:[%s179 + $0x38] sm:$0xff]
        %v188 = vld [vmem:[%s179 + $0x40] sm:$0xff]
        %v189 = vld [vmem:[%s179 + $0x48] sm:$0xff]
        %v190 = vld [vmem:[%s179 + $0x50] sm:$0xff]
        %v191 = vld [vmem:[%s179 + $0x58] sm:$0xff]
        %v192 = vld [vmem:[%s179 + $0x60] sm:$0xff]
        %v193 = vld [vmem:[%s179 + $0x68] sm:$0xff]
        %v194 = vld [vmem:[%s179 + $0x70] sm:$0xff]
        %v195 = vld [vmem:[%s179 + $0x78] sm:$0xff]
        %v196 = vld [vmem:[%s179 + $0x80] sm:$0xff]
        %v197 = vld [vmem:[%s179 + $0x88] sm:$0xff]
        %v201 = vunpack.c.l.b16 %v158
        %v202 = vunpack.c.l.b16 %v159
        %v203 = vunpack.c.l.b16 %v160
        %v204 = vpack.c.b16 %v202, %v201
        %v205 = vpack.c.b16 %v203, %v203
        %vm206 = vsmask.f32 7424
        %v208 = vshrl.u32 %v204, 16
        %v210 = vshll.u32 %v204, 16
        %v212 = vrot.slane %v210, 1
        %v213 = vor.u32 %v208, %v212
        %v215 = vshll.u32 %v205, 16
        %v217 = vrot.slane %v215, 1
        %v218 = vsel %vm206, %v213, %v217
        %v237 = vunpack.c.l.b16 %v180
        %v238 = vunpack.c.h.b16 %v180
        %v239 = vunpack.c.l.b16 %v181
        %v240 = vunpack.c.h.b16 %v181
        %v241 = vunpack.c.l.b16 %v182
        %v242 = vunpack.c.h.b16 %v182
        %v243 = vunpack.c.l.b16 %v183
        %v244 = vunpack.c.h.b16 %v183
        %v245 = vunpack.c.l.b16 %v184
        %v246 = vunpack.c.h.b16 %v184
        %v247 = vunpack.c.l.b16 %v185
        %v248 = vunpack.c.h.b16 %v185
        %v249 = vunpack.c.l.b16 %v186
        %v250 = vunpack.c.h.b16 %v186
        %v251 = vunpack.c.l.b16 %v187
        %v252 = vunpack.c.h.b16 %v187
        %v253 = vunpack.c.l.b16 %v188
        %v254 = vunpack.c.h.b16 %v188
        %v255 = vunpack.c.l.b16 %v189
        %v256 = vunpack.c.h.b16 %v189
        %v257 = vunpack.c.l.b16 %v190
        %v258 = vunpack.c.h.b16 %v190
        %v259 = vunpack.c.l.b16 %v191
        %v260 = vunpack.c.h.b16 %v191
        %v261 = vunpack.c.l.b16 %v192
        %v262 = vunpack.c.h.b16 %v192
        %v263 = vunpack.c.l.b16 %v193
        %v264 = vunpack.c.h.b16 %v193
        %v265 = vunpack.c.l.b16 %v194
        %v266 = vunpack.c.h.b16 %v194
        %v267 = vunpack.c.l.b16 %v195
        %v268 = vunpack.c.h.b16 %v195
        %v269 = vunpack.c.l.b16 %v196
        %v270 = vunpack.c.h.b16 %v196
        %v271 = vunpack.c.l.b16 %v197
        %v272 = vunpack.c.h.b16 %v197
        %v273 = vpack.c.b16 %v241, %v237
        %v274 = vpack.c.b16 %v242, %v238
        %v275 = vpack.c.b16 %v243, %v239
        %v276 = vpack.c.b16 %v244, %v240
        %v277 = vpack.c.b16 %v249, %v245
        %v278 = vpack.c.b16 %v250, %v246
        %v279 = vpack.c.b16 %v251, %v247
        %v280 = vpack.c.b16 %v252, %v248
        %v281 = vpack.c.b16 %v257, %v253
        %v282 = vpack.c.b16 %v258, %v254
        %v283 = vpack.c.b16 %v259, %v255
        %v284 = vpack.c.b16 %v260, %v256
        %v285 = vpack.c.b16 %v265, %v261
        %v286 = vpack.c.b16 %v266, %v262
        %v287 = vpack.c.b16 %v267, %v263
        %v288 = vpack.c.b16 %v268, %v264
        %v289 = vpack.c.b16 %v269, %v269
        %v290 = vpack.c.b16 %v270, %v270
        %v291 = vpack.c.b16 %v271, %v271
        %v292 = vpack.c.b16 %v272, %v272
        %vm309 = vcmask 588800
        %v311 = vsel %vm309, %v218, 0
        %vm313 = vcmask 1043456
        %v315 = vsel %vm313, %v289, 0
        %v318 = vsel %vm313, %v290, 0
        %v321 = vsel %vm313, %v291, 0
        %v324 = vsel %vm313, %v292, 0
        %326 = vmatprep.subr.bf16.mxu0 0
        %327 = vmatpush1.bf16.msra.mxu0 0
        %328 = vmatprep.subr.bf16.mxu0 0
        %329 = vmatpush1.bf16.msra.mxu0 0
        %330 = vmatprep.subr.bf16.mxu0 0
        %331 = vmatpush1.bf16.msra.mxu0 0
        %332 = vmatprep.subr.bf16.mxu0 %v318
        %333 = vmatpush1.bf16.msra.mxu0 %v315
        %334 = vmatprep.subr.bf16.mxu0 %v286
        %335 = vmatpush1.bf16.msra.mxu0 %v285
        %336 = vmatprep.subr.bf16.mxu0 %v282
        %337 = vmatpush1.bf16.msra.mxu0 %v281
        %338 = vmatprep.subr.bf16.mxu0 %v278
        %339 = vmatpush1.bf16.msra.mxu0 %v277
        %340 = vmatprep.subr.bf16.mxu0 %v274
        %341 = vmatpush1.bf16.msra.mxu0 %v273
        %342 = vmatprep.subr.bf16.mxu0 0
        %343 = vmatpush2.bf16.msra.mxu0 0
        %344 = vmatprep.subr.bf16.mxu0 0
        %345 = vmatpush2.bf16.msra.mxu0 0
        %346 = vmatprep.subr.bf16.mxu0 0
        %347 = vmatpush2.bf16.msra.mxu0 0
        %348 = vmatprep.subr.bf16.mxu0 0
        %349 = vmatpush2.bf16.msra.mxu0 0
        %350 = vmatprep.subr.bf16.mxu0 0
        %351 = vmatpush2.bf16.msra.mxu0 0
        %352 = vmatprep.subr.bf16.mxu0 0
        %353 = vmatpush2.bf16.msra.mxu0 0
        %354 = vmatprep.subr.bf16.mxu0 0
        %355 = vmatpush2.bf16.msra.mxu0 0
        %356 = vmatprep.subr.bf16.mxu0 0
        %357 = vmatpush2.bf16.msra.mxu0 0
        %358 = vmatprep.mubr.bf16.mxu0 0
        %359 = vmatmul.mubr.bf16.gmra.mxu0 %v311
        %v360 = vpop.f32.mrf.mxu0
        %v361 = vadd.f32 0.0, %v360
        %v362 = vpop.f32.mrf.mxu0
        %v363 = vadd.f32 0.0, %v362
        %v364 = vpop.f32.mrf.mxu0
        %v365 = vadd.f32 0.0, %v364
        %v366 = vpop.f32.mrf.mxu0
        %v367 = vadd.f32 0.0, %v366
        %368 = vdwg.mxu0
        %369 = vmatprep.subr.bf16.mxu0 0
        %370 = vmatpush1.bf16.msra.mxu0 0
        %371 = vmatprep.subr.bf16.mxu0 0
        %372 = vmatpush1.bf16.msra.mxu0 0
        %373 = vmatprep.subr.bf16.mxu0 0
        %374 = vmatpush1.bf16.msra.mxu0 0
        %375 = vmatprep.subr.bf16.mxu0 %v324
        %376 = vmatpush1.bf16.msra.mxu0 %v321
        %377 = vmatprep.subr.bf16.mxu0 %v288
        %378 = vmatpush1.bf16.msra.mxu0 %v287
        %379 = vmatprep.subr.bf16.mxu0 %v284
        %380 = vmatpush1.bf16.msra.mxu0 %v283
        %381 = vmatprep.subr.bf16.mxu0 %v280
        %382 = vmatpush1.bf16.msra.mxu0 %v279
        %383 = vmatprep.subr.bf16.mxu0 %v276
        %384 = vmatpush1.bf16.msra.mxu0 %v275
        %385 = vmatprep.subr.bf16.mxu0 0
        %386 = vmatpush2.bf16.msra.mxu0 0
        %387 = vmatprep.subr.bf16.mxu0 0
        %388 = vmatpush2.bf16.msra.mxu0 0
        %389 = vmatprep.subr.bf16.mxu0 0
        %390 = vmatpush2.bf16.msra.mxu0 0
        %391 = vmatprep.subr.bf16.mxu0 0
        %392 = vmatpush2.bf16.msra.mxu0 0
        %393 = vmatprep.subr.bf16.mxu0 0
        %394 = vmatpush2.bf16.msra.mxu0 0
        %395 = vmatprep.subr.bf16.mxu0 0
        %396 = vmatpush2.bf16.msra.mxu0 0
        %397 = vmatprep.subr.bf16.mxu0 0
        %398 = vmatpush2.bf16.msra.mxu0 0
        %399 = vmatprep.subr.bf16.mxu0 0
        %400 = vmatpush2.bf16.msra.mxu0 0
        %401 = vmatprep.mubr.bf16.mxu0 0
        %402 = vmatmul.mubr.bf16.gmra.mxu0 %v311
        %v403 = vpop.f32.mrf.mxu0
        %v404 = vadd.f32 0.0, %v403
        %v405 = vpop.f32.mrf.mxu0
        %v406 = vadd.f32 0.0, %v405
        %v407 = vpop.f32.mrf.mxu0
        %v408 = vadd.f32 0.0, %v407
        %v409 = vpop.f32.mrf.mxu0
        %v410 = vadd.f32 0.0, %v409
        %411 = vdwg.mxu0
        %v430 = vunpack.c.l.b16 %v161
        %v431 = vunpack.c.h.b16 %v161
        %v432 = vunpack.c.l.b16 %v162
        %v433 = vunpack.c.h.b16 %v162
        %v434 = vunpack.c.l.b16 %v163
        %v435 = vunpack.c.h.b16 %v163
        %v436 = vunpack.c.l.b16 %v164
        %v437 = vunpack.c.h.b16 %v164
        %v438 = vunpack.c.l.b16 %v165
        %v439 = vunpack.c.h.b16 %v165
        %v440 = vunpack.c.l.b16 %v166
        %v441 = vunpack.c.h.b16 %v166
        %v442 = vunpack.c.l.b16 %v167
        %v443 = vunpack.c.h.b16 %v167
        %v444 = vunpack.c.l.b16 %v168
        %v445 = vunpack.c.h.b16 %v168
        %v446 = vunpack.c.l.b16 %v169
        %v447 = vunpack.c.h.b16 %v169
        %v448 = vunpack.c.l.b16 %v170
        %v449 = vunpack.c.h.b16 %v170
        %v450 = vunpack.c.l.b16 %v171
        %v451 = vunpack.c.h.b16 %v171
        %v452 = vunpack.c.l.b16 %v172
        %v453 = vunpack.c.h.b16 %v172
        %v454 = vunpack.c.l.b16 %v173
        %v455 = vunpack.c.h.b16 %v173
        %v456 = vunpack.c.l.b16 %v174
        %v457 = vunpack.c.h.b16 %v174
        %v458 = vunpack.c.l.b16 %v175
        %v459 = vunpack.c.h.b16 %v175
        %v460 = vunpack.c.l.b16 %v176
        %v461 = vunpack.c.h.b16 %v176
        %v462 = vunpack.c.l.b16 %v177
        %v463 = vunpack.c.h.b16 %v177
        %v464 = vunpack.c.l.b16 %v178
        %v465 = vunpack.c.h.b16 %v178
        %v466 = vpack.c.b16 %v434, %v430
        %v467 = vpack.c.b16 %v435, %v431
        %v468 = vpack.c.b16 %v436, %v432
        %v469 = vpack.c.b16 %v437, %v433
        %v470 = vpack.c.b16 %v442, %v438
        %v471 = vpack.c.b16 %v443, %v439
        %v472 = vpack.c.b16 %v444, %v440
        %v473 = vpack.c.b16 %v445, %v441
        %v474 = vpack.c.b16 %v450, %v446
        %v475 = vpack.c.b16 %v451, %v447
        %v476 = vpack.c.b16 %v452, %v448
        %v477 = vpack.c.b16 %v453, %v449
        %v478 = vpack.c.b16 %v458, %v454
        %v479 = vpack.c.b16 %v459, %v455
        %v480 = vpack.c.b16 %v460, %v456
        %v481 = vpack.c.b16 %v461, %v457
        %v482 = vpack.c.b16 %v462, %v462
        %v483 = vpack.c.b16 %v463, %v463
        %v484 = vpack.c.b16 %v464, %v464
        %v485 = vpack.c.b16 %v465, %v465
        %v502 = vsel %vm309, %v204, 0
        %v505 = vsel %vm313, %v482, 0
        %v508 = vsel %vm313, %v483, 0
        %v511 = vsel %vm313, %v484, 0
        %v514 = vsel %vm313, %v485, 0
        %516 = vmatprep.subr.bf16.mxu0 0
        %517 = vmatpush1.bf16.msra.mxu0 0
        %518 = vmatprep.subr.bf16.mxu0 0
        %519 = vmatpush1.bf16.msra.mxu0 0
        %520 = vmatprep.subr.bf16.mxu0 0
        %521 = vmatpush1.bf16.msra.mxu0 0
        %522 = vmatprep.subr.bf16.mxu0 %v508
        %523 = vmatpush1.bf16.msra.mxu0 %v505
        %524 = vmatprep.subr.bf16.mxu0 %v479
        %525 = vmatpush1.bf16.msra.mxu0 %v478
        %526 = vmatprep.subr.bf16.mxu0 %v475
        %527 = vmatpush1.bf16.msra.mxu0 %v474
        %528 = vmatprep.subr.bf16.mxu0 %v471
        %529 = vmatpush1.bf16.msra.mxu0 %v470
        %530 = vmatprep.subr.bf16.mxu0 %v467
        %531 = vmatpush1.bf16.msra.mxu0 %v466
        %532 = vmatprep.subr.bf16.mxu0 0
        %533 = vmatpush2.bf16.msra.mxu0 0
        %534 = vmatprep.subr.bf16.mxu0 0
        %535 = vmatpush2.bf16.msra.mxu0 0
        %536 = vmatprep.subr.bf16.mxu0 0
        %537 = vmatpush2.bf16.msra.mxu0 0
        %538 = vmatprep.subr.bf16.mxu0 0
        %539 = vmatpush2.bf16.msra.mxu0 0
        %540 = vmatprep.subr.bf16.mxu0 0
        %541 = vmatpush2.bf16.msra.mxu0 0
        %542 = vmatprep.subr.bf16.mxu0 0
        %543 = vmatpush2.bf16.msra.mxu0 0
        %544 = vmatprep.subr.bf16.mxu0 0
        %545 = vmatpush2.bf16.msra.mxu0 0
        %546 = vmatprep.subr.bf16.mxu0 0
        %547 = vmatpush2.bf16.msra.mxu0 0
        %548 = vmatprep.mubr.bf16.mxu0 0
        %549 = vmatmul.mubr.bf16.gmra.mxu0 %v502
        %v550 = vpop.f32.mrf.mxu0
        %v551 = vadd.f32 %v361, %v550
        %v552 = vpop.f32.mrf.mxu0
        %v553 = vadd.f32 %v363, %v552
        %v554 = vpop.f32.mrf.mxu0
        %v555 = vadd.f32 %v365, %v554
        %v556 = vpop.f32.mrf.mxu0
        %v557 = vadd.f32 %v367, %v556
        %558 = vdwg.mxu0
        %559 = vmatprep.subr.bf16.mxu0 0
        %560 = vmatpush1.bf16.msra.mxu0 0
        %561 = vmatprep.subr.bf16.mxu0 0
        %562 = vmatpush1.bf16.msra.mxu0 0
        %563 = vmatprep.subr.bf16.mxu0 0
        %564 = vmatpush1.bf16.msra.mxu0 0
        %565 = vmatprep.subr.bf16.mxu0 %v514
        %566 = vmatpush1.bf16.msra.mxu0 %v511
        %567 = vmatprep.subr.bf16.mxu0 %v481
        %568 = vmatpush1.bf16.msra.mxu0 %v480
        %569 = vmatprep.subr.bf16.mxu0 %v477
        %570 = vmatpush1.bf16.msra.mxu0 %v476
        %571 = vmatprep.subr.bf16.mxu0 %v473
        %572 = vmatpush1.bf16.msra.mxu0 %v472
        %573 = vmatprep.subr.bf16.mxu0 %v469
        %574 = vmatpush1.bf16.msra.mxu0 %v468
        %575 = vmatprep.subr.bf16.mxu0 0
        %576 = vmatpush2.bf16.msra.mxu0 0
        %577 = vmatprep.subr.bf16.mxu0 0
        %578 = vmatpush2.bf16.msra.mxu0 0
        %579 = vmatprep.subr.bf16.mxu0 0
        %580 = vmatpush2.bf16.msra.mxu0 0
        %581 = vmatprep.subr.bf16.mxu0 0
        %582 = vmatpush2.bf16.msra.mxu0 0
        %583 = vmatprep.subr.bf16.mxu0 0
        %584 = vmatpush2.bf16.msra.mxu0 0
        %585 = vmatprep.subr.bf16.mxu0 0
        %586 = vmatpush2.bf16.msra.mxu0 0
        %587 = vmatprep.subr.bf16.mxu0 0
        %588 = vmatpush2.bf16.msra.mxu0 0
        %589 = vmatprep.subr.bf16.mxu0 0
        %590 = vmatpush2.bf16.msra.mxu0 0
        %591 = vmatprep.mubr.bf16.mxu0 0
        %592 = vmatmul.mubr.bf16.gmra.mxu0 %v502
        %v593 = vpop.f32.mrf.mxu0
        %v594 = vadd.f32 %v404, %v593
        %v595 = vpop.f32.mrf.mxu0
        %v596 = vadd.f32 %v406, %v595
        %v597 = vpop.f32.mrf.mxu0
        %v598 = vadd.f32 %v408, %v597
        %v599 = vpop.f32.mrf.mxu0
        %v600 = vadd.f32 %v410, %v599
        %601 = vdwg.mxu0
        %s602 = scalar_lea.vmem [#allocation2], 288
        %v603 = vld [vmem:[%s602] sm:$0xff]
        %v604 = vld [vmem:[%s602 + $0x8] sm:$0xff]
        %v605 = vld [vmem:[%s602 + $0x10] sm:$0xff]
        %v606 = vld [vmem:[%s602 + $0x18] sm:$0xff]
        %v607 = vld [vmem:[%s602 + $0x20] sm:$0xff]
        %v608 = vld [vmem:[%s602 + $0x28] sm:$0xff]
        %v609 = vld [vmem:[%s602 + $0x30] sm:$0xff]
        %v610 = vld [vmem:[%s602 + $0x38] sm:$0xff]
        %v611 = vld [vmem:[%s602 + $0x40] sm:$0xff]
        %v612 = vld [vmem:[%s602 + $0x48] sm:$0xff]
        %v613 = vld [vmem:[%s602 + $0x50] sm:$0xff]
        %v614 = vld [vmem:[%s602 + $0x58] sm:$0xff]
        %v615 = vld [vmem:[%s602 + $0x60] sm:$0xff]
        %v616 = vld [vmem:[%s602 + $0x68] sm:$0xff]
        %v617 = vld [vmem:[%s602 + $0x70] sm:$0xff]
        %v618 = vld [vmem:[%s602 + $0x78] sm:$0xff]
        %v619 = vld [vmem:[%s602 + $0x80] sm:$0xff]
        %v620 = vld [vmem:[%s602 + $0x88] sm:$0xff]
        %vm621 = vcmask 1046528
        %v622 = vrot.slane %v204, 1
        %v623 = vrot.slane %v205, 1
        %v624 = vsel %vm621, %v622, %v623
        %v643 = vunpack.c.l.b16 %v603
        %v644 = vunpack.c.h.b16 %v603
        %v645 = vunpack.c.l.b16 %v604
        %v646 = vunpack.c.h.b16 %v604
        %v647 = vunpack.c.l.b16 %v605
        %v648 = vunpack.c.h.b16 %v605
        %v649 = vunpack.c.l.b16 %v606
        %v650 = vunpack.c.h.b16 %v606
        %v651 = vunpack.c.l.b16 %v607
        %v652 = vunpack.c.h.b16 %v607
        %v653 = vunpack.c.l.b16 %v608
        %v654 = vunpack.c.h.b16 %v608
        %v655 = vunpack.c.l.b16 %v609
        %v656 = vunpack.c.h.b16 %v609
        %v657 = vunpack.c.l.b16 %v610
        %v658 = vunpack.c.h.b16 %v610
        %v659 = vunpack.c.l.b16 %v611
        %v660 = vunpack.c.h.b16 %v611
        %v661 = vunpack.c.l.b16 %v612
        %v662 = vunpack.c.h.b16 %v612
        %v663 = vunpack.c.l.b16 %v613
        %v664 = vunpack.c.h.b16 %v613
        %v665 = vunpack.c.l.b16 %v614
        %v666 = vunpack.c.h.b16 %v614
        %v667 = vunpack.c.l.b16 %v615
        %v668 = vunpack.c.h.b16 %v615
        %v669 = vunpack.c.l.b16 %v616
        %v670 = vunpack.c.h.b16 %v616
        %v671 = vunpack.c.l.b16 %v617
        %v672 = vunpack.c.h.b16 %v617
        %v673 = vunpack.c.l.b16 %v618
        %v674 = vunpack.c.h.b16 %v618
        %v675 = vunpack.c.l.b16 %v619
        %v676 = vunpack.c.h.b16 %v619
        %v677 = vunpack.c.l.b16 %v620
        %v678 = vunpack.c.h.b16 %v620
        %v679 = vpack.c.b16 %v647, %v643
        %v680 = vpack.c.b16 %v648, %v644
        %v681 = vpack.c.b16 %v649, %v645
        %v682 = vpack.c.b16 %v650, %v646
        %v683 = vpack.c.b16 %v655, %v651
        %v684 = vpack.c.b16 %v656, %v652
        %v685 = vpack.c.b16 %v657, %v653
        %v686 = vpack.c.b16 %v658, %v654
        %v687 = vpack.c.b16 %v663, %v659
        %v688 = vpack.c.b16 %v664, %v660
        %v689 = vpack.c.b16 %v665, %v661
        %v690 = vpack.c.b16 %v666, %v662
        %v691 = vpack.c.b16 %v671, %v667
        %v692 = vpack.c.b16 %v672, %v668
        %v693 = vpack.c.b16 %v673, %v669
        %v694 = vpack.c.b16 %v674, %v670
        %v695 = vpack.c.b16 %v675, %v675
        %v696 = vpack.c.b16 %v676, %v676
        %v697 = vpack.c.b16 %v677, %v677
        %v698 = vpack.c.b16 %v678, %v678
        %v716 = vsel %vm309, %v624, 0
        %v719 = vsel %vm313, %v695, 0
        %v722 = vsel %vm313, %v696, 0
        %v725 = vsel %vm313, %v697, 0
        %v728 = vsel %vm313, %v698, 0
        %730 = vmatprep.subr.bf16.mxu0 0
        %731 = vmatpush1.bf16.msra.mxu0 0
        %732 = vmatprep.subr.bf16.mxu0 0
        %733 = vmatpush1.bf16.msra.mxu0 0
        %734 = vmatprep.subr.bf16.mxu0 0
        %735 = vmatpush1.bf16.msra.mxu0 0
        %736 = vmatprep.subr.bf16.mxu0 %v722
        %737 = vmatpush1.bf16.msra.mxu0 %v719
        %738 = vmatprep.subr.bf16.mxu0 %v692
        %739 = vmatpush1.bf16.msra.mxu0 %v691
        %740 = vmatprep.subr.bf16.mxu0 %v688
        %741 = vmatpush1.bf16.msra.mxu0 %v687
        %742 = vmatprep.subr.bf16.mxu0 %v684
        %743 = vmatpush1.bf16.msra.mxu0 %v683
        %744 = vmatprep.subr.bf16.mxu0 %v680
        %745 = vmatpush1.bf16.msra.mxu0 %v679
        %746 = vmatprep.subr.bf16.mxu0 0
        %747 = vmatpush2.bf16.msra.mxu0 0
        %748 = vmatprep.subr.bf16.mxu0 0
        %749 = vmatpush2.bf16.msra.mxu0 0
        %750 = vmatprep.subr.bf16.mxu0 0
        %751 = vmatpush2.bf16.msra.mxu0 0
        %752 = vmatprep.subr.bf16.mxu0 0
        %753 = vmatpush2.bf16.msra.mxu0 0
        %754 = vmatprep.subr.bf16.mxu0 0
        %755 = vmatpush2.bf16.msra.mxu0 0
        %756 = vmatprep.subr.bf16.mxu0 0
        %757 = vmatpush2.bf16.msra.mxu0 0
        %758 = vmatprep.subr.bf16.mxu0 0
        %759 = vmatpush2.bf16.msra.mxu0 0
        %760 = vmatprep.subr.bf16.mxu0 0
        %761 = vmatpush2.bf16.msra.mxu0 0
        %762 = vmatprep.mubr.bf16.mxu0 0
        %763 = vmatmul.mubr.bf16.gmra.mxu0 %v716
        %v764 = vpop.f32.mrf.mxu0
        %v765 = vadd.f32 0.0, %v764
        %v766 = vpop.f32.mrf.mxu0
        %v767 = vadd.f32 0.0, %v766
        %v768 = vpop.f32.mrf.mxu0
        %v769 = vadd.f32 0.0, %v768
        %v770 = vpop.f32.mrf.mxu0
        %v771 = vadd.f32 0.0, %v770
        %772 = vdwg.mxu0
        %773 = vmatprep.subr.bf16.mxu0 0
        %774 = vmatpush1.bf16.msra.mxu0 0
        %775 = vmatprep.subr.bf16.mxu0 0
        %776 = vmatpush1.bf16.msra.mxu0 0
        %777 = vmatprep.subr.bf16.mxu0 0
        %778 = vmatpush1.bf16.msra.mxu0 0
        %779 = vmatprep.subr.bf16.mxu0 %v728
        %780 = vmatpush1.bf16.msra.mxu0 %v725
        %781 = vmatprep.subr.bf16.mxu0 %v694
        %782 = vmatpush1.bf16.msra.mxu0 %v693
        %783 = vmatprep.subr.bf16.mxu0 %v690
        %784 = vmatpush1.bf16.msra.mxu0 %v689
        %785 = vmatprep.subr.bf16.mxu0 %v686
        %786 = vmatpush1.bf16.msra.mxu0 %v685
        %787 = vmatprep.subr.bf16.mxu0 %v682
        %788 = vmatpush1.bf16.msra.mxu0 %v681
        %789 = vmatprep.subr.bf16.mxu0 0
        %790 = vmatpush2.bf16.msra.mxu0 0
        %791 = vmatprep.subr.bf16.mxu0 0
        %792 = vmatpush2.bf16.msra.mxu0 0
        %793 = vmatprep.subr.bf16.mxu0 0
        %794 = vmatpush2.bf16.msra.mxu0 0
        %795 = vmatprep.subr.bf16.mxu0 0
        %796 = vmatpush2.bf16.msra.mxu0 0
        %797 = vmatprep.subr.bf16.mxu0 0
        %798 = vmatpush2.bf16.msra.mxu0 0
        %799 = vmatprep.subr.bf16.mxu0 0
        %800 = vmatpush2.bf16.msra.mxu0 0
        %801 = vmatprep.subr.bf16.mxu0 0
        %802 = vmatpush2.bf16.msra.mxu0 0
        %803 = vmatprep.subr.bf16.mxu0 0
        %804 = vmatpush2.bf16.msra.mxu0 0
        %805 = vmatprep.mubr.bf16.mxu0 0
        %806 = vmatmul.mubr.bf16.gmra.mxu0 %v716
        %v807 = vpop.f32.mrf.mxu0
        %v808 = vadd.f32 0.0, %v807
        %v809 = vpop.f32.mrf.mxu0
        %v810 = vadd.f32 0.0, %v809
        %v811 = vpop.f32.mrf.mxu0
        %v812 = vadd.f32 0.0, %v811
        %v813 = vpop.f32.mrf.mxu0
        %v814 = vadd.f32 0.0, %v813
        %815 = vdwg.mxu0
        %v816 = vadd.f32 %v551, %v765
        %v817 = vadd.f32 %v553, %v767
        %v818 = vadd.f32 %v594, %v808
        %v819 = vadd.f32 %v596, %v810
        %v820 = vadd.f32 %v555, %v769
        %v821 = vadd.f32 %v557, %v771
        %v822 = vadd.f32 %v598, %v812
        %v823 = vadd.f32 %v600, %v814
        %824 = vst [vmem:[%s151] sm:$0xff] %v816
        %825 = vst [vmem:[%s151 + $0x8] sm:$0xff] %v817
        %826 = vst [vmem:[%s151 + $0x10] sm:$0xff] %v818
        %827 = vst [vmem:[%s151 + $0x18] sm:$0xff] %v819
        %828 = vst [vmem:[%s151 + $0x20] sm:$0xff] %v820
        %829 = vst [vmem:[%s151 + $0x28] sm:$0xff] %v821
        %830 = vst [vmem:[%s151 + $0x30] sm:$0xff] %v822
        %831 = vst [vmem:[%s151 + $0x38] sm:$0xff] %v823
        %s832 = sand.u32 %s72, 1
        %s833 = scalar_lea.sflag [#allocation4], %s832
        %s834 = sand.u32 %s72, 1
        %s835 = smul.addr %s834, 64
        %s836 = scalar_lea.vmem [#allocation5], %s835
        // Predicated region
        $region33: #{tpu_custom_call.1} parent=27 // pred_check
          %p837 = pneg %p82
        $region34: #{tpu_custom_call.1} parent=27 // pred_check_branch
          %839 = sbr.rel (%p837) target = $region36
        $region35: #{tpu_custom_call.1} parent=27 // pred_region
          %s841 = ssub.s32 1024, 1024
          %842 = vsyncadd %s833, %s841
          %s843 = smul.addr %s17, 8
          %s844 = smul.addr %s843, 128
          %s845 = scalar_lea.hbm %s2, %s844
          %s846 = sshll.u32 %s836, 4
          %s847 = int_to_ptr.vmem [resolvable:$true] %s846
          %852 = dma.vmem_to_hbm [thread:$0]  %s847, 1024, %s845, %s833, 512, 512, 32
        $region36: #{tpu_custom_call.1} parent=27 // pred_fallthru
          _
      $region28: #{tpu_custom_call.1} parent=5 // pred_fallthru
        _
      %p853 = scmp.le.s32.totalorder 2, %s12
      // Predicated region
      $region37: #{tpu_custom_call.1} parent=5 // pred_check
        %p854 = pneg %p853
      $region38: #{tpu_custom_call.1} parent=5 // pred_check_branch
        %856 = sbr.rel (%p854) target = $region40
      $region39: #{tpu_custom_call.1} parent=5 // pred_region
        %s857 = ssub.s32 %s12, 2
        // Predicated region
        $region41: #{tpu_custom_call.1} parent=39 // pred_check
          %p858 = pneg %p88
        $region42: #{tpu_custom_call.1} parent=39 // pred_check_branch
          %860 = sbr.rel (%p858) target = $region44
        $region43: #{tpu_custom_call.1} parent=39 // pred_region
          %s861 = sand.u32 %s73, 1
          %s862 = scalar_lea.sflag [#allocation4], %s861
          %s863 = sand.u32 %s73, 1
          %s864 = smul.addr %s863, 64
          %s865 = scalar_lea.vmem [#allocation5], %s864
          %866 = dma.done %s862, 1024
        $region44: #{tpu_custom_call.1} parent=39 // pred_fallthru
          _
      $region40: #{tpu_custom_call.1} parent=5 // pred_fallthru
        _
    $region6: #{tpu_custom_call.1} parent=1 // loop_footer
      %s16 = sadd.s32 1, %s12
    $region7: #{tpu_custom_call.1} parent=1 // loop_footer_branch
      %11 = sbr.rel target = $region3
    $region8: #{tpu_custom_call.1} parent=1 // loop_exit
      _
    %867 = vsyncpa [#allocation3], 1
    %s868 = scalar_lea.sflag [#allocation3], 1
    %869 = vsyncpa %s868, 1
    %870 = vsyncpa [#allocation4], 1
    %s871 = scalar_lea.sflag [#allocation4], 1
    %872 = vsyncpa %s871, 1

</llo_original>
